<compile_context>
chip_gen: v5e
topology: v5e:2x2
jax: 0.10.0
libtpu: 0.0.40
codegen_flags: <defaults>
</compile_context>

<pallas_src>
import functools

import jax
import jax.numpy as jnp
from jax.experimental import pallas as pl
from jax.experimental.pallas import tpu as pltpu


def _ts2vec_kernel(x_ref, w1_ref, b1_ref, w2_ref, b2_ref, o_ref,
                   xpad_ref, hpad_ref):
    """One batch-tile of the forward pass.

    x_ref   : (TN, Cin, L)    raw NCL input tile
    w1_ref  : (K, Cin, H)     conv1 taps
    b1_ref  : (1, H)
    w2_ref  : (K, H, Cout)    conv2 taps
    b2_ref  : (1, Cout)
    o_ref   : (TN, Cout)      max-pooled embedding
    xpad_ref: (TN, L+2, Cin)  time-major normalized input with halo rows (scratch)
    hpad_ref: (TN, L+2, H)    hidden activations with halo rows (scratch)
    """
    TN, Cin, L = x_ref.shape
    K = w1_ref.shape[0]
    H = w1_ref.shape[2]
    Cout = w2_ref.shape[2]
    R = TN * L

    # --- per-(sample, channel) z-normalization over the time (lane) axis ---
    # (x - mean) is reused for the variance, so x is only read once.
    x = x_ref[...]
    mean = jnp.mean(x, axis=2, keepdims=True)
    xc = x - mean
    var = jnp.mean(xc * xc, axis=2, keepdims=True)
    xn = xc * jax.lax.rsqrt(var + 1e-8)                     # (TN, Cin, L)

    # --- fused NCL -> NLC transpose into the halo scratch ---
    # Only the two halo rows per sample are zeroed (no full-buffer zero fill).
    zero_row_x = jnp.zeros((TN, 1, Cin), jnp.float32)
    xpad_ref[:, 0:1, :] = zero_row_x
    xpad_ref[:, L + 1:L + 2, :] = zero_row_x
    for n in range(TN):                                     # cheap 2-D XLU transposes
        xpad_ref[n, 1:L + 1, :] = xn[n].T

    # --- conv1 (k=3, pad=1): K batched (TN*L, Cin) x (Cin, H) matmuls ---
    # TODO(synk): im2col the K taps into a single (TN*L, K*Cin) x (K*Cin, H)
    # matmul (deeper MXU contraction) once lane-axis concat is worth it.
    acc1 = None
    for k in range(K):
        a_k = xpad_ref[:, k:k + L, :].reshape(R, Cin)
        d_k = jnp.dot(a_k, w1_ref[k], preferred_element_type=jnp.float32)
        acc1 = d_k if acc1 is None else acc1 + d_k
    h = jnp.maximum(acc1 + b1_ref[...], 0.0)                # (R, H)

    # --- stash hidden activations with halos for the second conv ---
    zero_row_h = jnp.zeros((TN, 1, H), jnp.float32)
    hpad_ref[:, 0:1, :] = zero_row_h
    hpad_ref[:, L + 1:L + 2, :] = zero_row_h
    hpad_ref[:, 1:L + 1, :] = h.reshape(TN, L, H)

    # --- conv2 (k=3, pad=1): K batched (TN*L, H) x (H, Cout) matmuls ---
    acc2 = None
    for k in range(K):
        a_k = hpad_ref[:, k:k + L, :].reshape(R, H)
        d_k = jnp.dot(a_k, w2_ref[k], preferred_element_type=jnp.float32)
        acc2 = d_k if acc2 is None else acc2 + d_k
    y = acc2 + b2_ref[...]                                  # (R, Cout)

    # --- AdaptiveMaxPool1d(1): max over time, single (TN, Cout) store ---
    o_ref[...] = jnp.max(y.reshape(TN, L, Cout), axis=1)


@functools.partial(jax.jit, static_argnames=("tile_n",))
def ts2vec_forward(ts_ncl, w1, b1, w2, b2, tile_n=None):
    """ts_ncl: (N, C_in, L) float32, PyTorch layout.  Returns (N, C_out)."""
    ts_ncl = ts_ncl.astype(jnp.float32)
    N, Cin, L = ts_ncl.shape
    K, _, H = w1.shape
    Cout = w2.shape[2]

    # Batch tile.  Per-step VMEM (with lane padding to 128) is roughly
    # 2 * tile_n * (L+2) * 128 * 4B of scratch plus double-buffered I/O blocks,
    # kept far below the scoped defaults (16 MiB v5e, 32 MiB v6e/v7x) and
    # v7x's 64 MiB physical VMEM at these shapes.
    if tile_n is None:
        tile_n = N if N <= 8 else 8
    grid = (pl.cdiv(N, tile_n),)

    # TODO(synk): for long series (L ~ thousands) add an L grid axis with a
    # one-step halo (overlapping index_map) so the working set stays bounded.
    # TODO(synk): optionally cast matmul inputs to bf16 on v6e/v7x if accuracy
    # permits (keep preferred_element_type=float32).
    return pl.pallas_call(
        _ts2vec_kernel,
        out_shape=jax.ShapeDtypeStruct((N, Cout), jnp.float32),
        grid_spec=pltpu.PrefetchScalarGridSpec(
            num_scalar_prefetch=0,
            grid=grid,
            in_specs=[
                pl.BlockSpec((tile_n, Cin, L), lambda i: (i, 0, 0)),
                pl.BlockSpec((K, Cin, H), lambda i: (0, 0, 0)),
                pl.BlockSpec((1, H), lambda i: (0, 0)),
                pl.BlockSpec((K, H, Cout), lambda i: (0, 0, 0)),
                pl.BlockSpec((1, Cout), lambda i: (0, 0)),
            ],
            out_specs=pl.BlockSpec((tile_n, Cout), lambda i: (i, 0)),
            scratch_shapes=[
                pltpu.VMEM((tile_n, L + 2, Cin), jnp.float32),
                pltpu.VMEM((tile_n, L + 2, H), jnp.float32),
            ],
        ),
        compiler_params=pltpu.CompilerParams(
            dimension_semantics=("parallel",),
            vmem_limit_bytes=32 * 1024 * 1024,
        ),
    )(ts_ncl, w1, b1.reshape(1, H), w2, b2.reshape(1, Cout))


def _reference(ts_ncl, w1, b1, w2, b2):
    """Pure-JAX reference of the same forward pass (for a sanity check)."""
    x = jnp.transpose(ts_ncl, (0, 2, 1)).astype(jnp.float32)  # (N, L, Cin)
    mean = jnp.mean(x, axis=1, keepdims=True)
    var = jnp.mean((x - mean) ** 2, axis=1, keepdims=True)
    xn = (x - mean) * jax.lax.rsqrt(var + 1e-8)
    L = x.shape[1]
    K = w1.shape[0]

    def conv(inp, w, b):
        pad = jnp.pad(inp, ((0, 0), (1, 1), (0, 0)))
        out = b[None, None, :]
        for k in range(K):
            out = out + jnp.einsum("nlc,co->nlo", pad[:, k:k + L, :], w[k])
        return out

    h = jnp.maximum(conv(xn, w1, b1), 0.0)
    y = conv(h, w2, b2)
    return jnp.max(y, axis=1)  # (N, Cout)


if __name__ == "__main__":
    # Small shapes consistent with the module's (N, C_in, L) -> (N, C_out) contract.
    N, C_IN, L = 2, 4, 16
    H, C_OUT, K = 32, 32, 3

    key = jax.random.PRNGKey(0)
    k_ts, k_w1, k_b1, k_w2, k_b2 = jax.random.split(key, 5)

    ts = jax.random.normal(k_ts, (N, C_IN, L), dtype=jnp.float32)

    # Deterministic synthetic parameters (kaiming-ish uniform scaling).
    s1 = 1.0 / (C_IN * K) ** 0.5
    s2 = 1.0 / (H * K) ** 0.5
    w1 = jax.random.uniform(k_w1, (K, C_IN, H), jnp.float32, -s1, s1)
    b1 = jax.random.uniform(k_b1, (H,), jnp.float32, -s1, s1)
    w2 = jax.random.uniform(k_w2, (K, H, C_OUT), jnp.float32, -s2, s2)
    b2 = jax.random.uniform(k_b2, (C_OUT,), jnp.float32, -s2, s2)

    out = ts2vec_forward(ts, w1, b1, w2, b2)
    out = jax.block_until_ready(out)

    ref = _reference(ts, w1, b1, w2, b2)
    assert out.shape == (N, C_OUT), out.shape
    assert jnp.allclose(out, ref, atol=1e-4, rtol=1e-4), (
        float(jnp.max(jnp.abs(out - ref))))

    print("KERNEL_OK")
</pallas_src>

<mosaic_0001>
module attributes {stable_mosaic.version = 11 : i64} {
  func.func @_ts2vec_kernel(%arg0: i32, %arg1: memref<2x4x16xf32, #tpu.memory_space<vmem>>, %arg2: memref<3x4x32xf32, #tpu.memory_space<vmem>>, %arg3: memref<1x32xf32, #tpu.memory_space<vmem>>, %arg4: memref<3x32x32xf32, #tpu.memory_space<vmem>>, %arg5: memref<1x32xf32, #tpu.memory_space<vmem>>, %arg6: memref<2x32xf32, #tpu.memory_space<vmem>>, %arg7: memref<2x18x4xf32, #tpu.memory_space<vmem>>, %arg8: memref<2x18x32xf32, #tpu.memory_space<vmem>>) attributes {dimension_semantics = [#tpu.dimension_semantics<parallel>], iteration_bounds = array<i64: 1>, scalar_prefetch = 0 : i64, scratch_operands = 2 : i64, tpu.core_type = #tpu.core_type<tc>, window_params = [{transform_indices = @transform_0, window_bounds = array<i64: 2, 4, 16>}, {pipeline_mode = #tpu.pipeline_mode<synchronous>, transform_indices = @transform_1, window_bounds = array<i64: 3, 4, 32>}, {pipeline_mode = #tpu.pipeline_mode<synchronous>, transform_indices = @transform_2, window_bounds = array<i64: 1, 32>}, {pipeline_mode = #tpu.pipeline_mode<synchronous>, transform_indices = @transform_3, window_bounds = array<i64: 3, 32, 32>}, {pipeline_mode = #tpu.pipeline_mode<synchronous>, transform_indices = @transform_4, window_bounds = array<i64: 1, 32>}, {transform_indices = @transform_5, window_bounds = array<i64: 2, 32>}]} {
    %c0 = arith.constant 0 : index
    %c0_0 = arith.constant 0 : index
    %c0_1 = arith.constant 0 : index
    %0 = vector.load %arg1[%c0, %c0_0, %c0_1] : memref<2x4x16xf32, #tpu.memory_space<vmem>>, vector<2x4x16xf32>
    %cst = arith.constant dense<0.000000e+00> : vector<2x4xf32>
    %1 = vector.multi_reduction <add>, %0, %cst [2] : vector<2x4x16xf32> to vector<2x4xf32>
    %2 = vector.shape_cast %1 : vector<2x4xf32> to vector<2x4x1xf32>
    %cst_2 = arith.constant 1.600000e+01 : f32
    %3 = vector.broadcast %cst_2 : f32 to vector<2x4x1xf32>
    %4 = arith.divf %2, %3 : vector<2x4x1xf32>
    %5 = vector.broadcast %4 : vector<2x4x1xf32> to vector<2x4x16xf32>
    %6 = arith.subf %0, %5 : vector<2x4x16xf32>
    %7 = arith.mulf %6, %6 : vector<2x4x16xf32>
    %cst_3 = arith.constant dense<0.000000e+00> : vector<2x4xf32>
    %8 = vector.multi_reduction <add>, %7, %cst_3 [2] : vector<2x4x16xf32> to vector<2x4xf32>
    %9 = vector.shape_cast %8 : vector<2x4xf32> to vector<2x4x1xf32>
    %cst_4 = arith.constant 1.600000e+01 : f32
    %10 = vector.broadcast %cst_4 : f32 to vector<2x4x1xf32>
    %11 = arith.divf %9, %10 : vector<2x4x1xf32>
    %cst_5 = arith.constant 9.99999993E-9 : f32
    %12 = vector.broadcast %cst_5 : f32 to vector<2x4x1xf32>
    %13 = arith.addf %11, %12 : vector<2x4x1xf32>
    %14 = math.rsqrt %13 : vector<2x4x1xf32>
    %15 = vector.broadcast %14 : vector<2x4x1xf32> to vector<2x4x16xf32>
    %16 = arith.mulf %6, %15 : vector<2x4x16xf32>
    %cst_6 = arith.constant 0.000000e+00 : f32
    %17 = vector.broadcast %cst_6 : f32 to vector<2x1x4xf32>
    %c0_7 = arith.constant 0 : index
    %c0_8 = arith.constant 0 : index
    %c0_9 = arith.constant 0 : index
    %18 = vector.load %arg7[%c0_7, %c0_8, %c0_9] : memref<2x18x4xf32, #tpu.memory_space<vmem>>, vector<2x1x4xf32>
    tpu.vector_store %arg7[%c0_7, %c0_8, %c0_9], %17 {strides = array<i32>} : memref<2x18x4xf32, #tpu.memory_space<vmem>>, vector<2x1x4xf32>,
    %c0_10 = arith.constant 0 : index
    %c17 = arith.constant 17 : index
    %c0_11 = arith.constant 0 : index
    %19 = vector.load %arg7[%c0_10, %c17, %c0_11] : memref<2x18x4xf32, #tpu.memory_space<vmem>>, vector<2x1x4xf32>
    tpu.vector_store %arg7[%c0_10, %c17, %c0_11], %17 {strides = array<i32>} : memref<2x18x4xf32, #tpu.memory_space<vmem>>, vector<2x1x4xf32>,
    %20 = vector.extract_strided_slice %16 {offsets = [0, 0, 0], sizes = [1, 4, 16], strides = [1, 1, 1]} : vector<2x4x16xf32> to vector<1x4x16xf32>
    %21 = vector.shape_cast %20 : vector<1x4x16xf32> to vector<4x16xf32>
    %22 = tpu.transpose %21, [1, 0] : vector<4x16xf32> -> vector<16x4xf32>
    %c0_12 = arith.constant 0 : index
    %c1 = arith.constant 1 : index
    %c0_13 = arith.constant 0 : index
    %23 = vector.load %arg7[%c0_12, %c1, %c0_13] : memref<2x18x4xf32, #tpu.memory_space<vmem>>, vector<1x16x4xf32>
    %24 = vector.shape_cast %23 : vector<1x16x4xf32> to vector<16x4xf32>
    %25 = vector.shape_cast %22 : vector<16x4xf32> to vector<1x16x4xf32>
    tpu.vector_store %arg7[%c0_12, %c1, %c0_13], %25 {strides = array<i32>} : memref<2x18x4xf32, #tpu.memory_space<vmem>>, vector<1x16x4xf32>,
    %26 = vector.extract_strided_slice %16 {offsets = [1, 0, 0], sizes = [1, 4, 16], strides = [1, 1, 1]} : vector<2x4x16xf32> to vector<1x4x16xf32>
    %27 = vector.shape_cast %26 : vector<1x4x16xf32> to vector<4x16xf32>
    %28 = tpu.transpose %27, [1, 0] : vector<4x16xf32> -> vector<16x4xf32>
    %c1_14 = arith.constant 1 : index
    %c1_15 = arith.constant 1 : index
    %c0_16 = arith.constant 0 : index
    %29 = vector.load %arg7[%c1_14, %c1_15, %c0_16] : memref<2x18x4xf32, #tpu.memory_space<vmem>>, vector<1x16x4xf32>
    %30 = vector.shape_cast %29 : vector<1x16x4xf32> to vector<16x4xf32>
    %31 = vector.shape_cast %28 : vector<16x4xf32> to vector<1x16x4xf32>
    tpu.vector_store %arg7[%c1_14, %c1_15, %c0_16], %31 {strides = array<i32>} : memref<2x18x4xf32, #tpu.memory_space<vmem>>, vector<1x16x4xf32>,
    %c0_17 = arith.constant 0 : index
    %c0_18 = arith.constant 0 : index
    %c0_19 = arith.constant 0 : index
    %32 = vector.load %arg7[%c0_17, %c0_18, %c0_19] : memref<2x18x4xf32, #tpu.memory_space<vmem>>, vector<2x16x4xf32>
    %33 = vector.shape_cast %32 : vector<2x16x4xf32> to vector<32x4xf32>
    %c0_20 = arith.constant 0 : index
    %c0_21 = arith.constant 0 : index
    %c0_22 = arith.constant 0 : index
    %34 = vector.load %arg2[%c0_20, %c0_21, %c0_22] : memref<3x4x32xf32, #tpu.memory_space<vmem>>, vector<1x4x32xf32>
    %35 = vector.shape_cast %34 : vector<1x4x32xf32> to vector<4x32xf32>
    %cst_23 = arith.constant dense<0.000000e+00> : vector<32x32xf32>
    %36 = tpu.matmul %33, %35, %cst_23 {dimension_numbers = #tpu.dot_dimension_numbers<[1], [0], [0], [1], [0, 0, 1, 1], [], []>} : vector<32x4xf32>, vector<4x32xf32>, vector<32x32xf32> -> vector<32x32xf32>
    %c0_24 = arith.constant 0 : index
    %c1_25 = arith.constant 1 : index
    %c0_26 = arith.constant 0 : index
    %37 = vector.load %arg7[%c0_24, %c1_25, %c0_26] : memref<2x18x4xf32, #tpu.memory_space<vmem>>, vector<2x16x4xf32>
    %38 = vector.shape_cast %37 : vector<2x16x4xf32> to vector<32x4xf32>
    %c1_27 = arith.constant 1 : index
    %c0_28 = arith.constant 0 : index
    %c0_29 = arith.constant 0 : index
    %39 = vector.load %arg2[%c1_27, %c0_28, %c0_29] : memref<3x4x32xf32, #tpu.memory_space<vmem>>, vector<1x4x32xf32>
    %40 = vector.shape_cast %39 : vector<1x4x32xf32> to vector<4x32xf32>
    %cst_30 = arith.constant dense<0.000000e+00> : vector<32x32xf32>
    %41 = tpu.matmul %38, %40, %cst_30 {dimension_numbers = #tpu.dot_dimension_numbers<[1], [0], [0], [1], [0, 0, 1, 1], [], []>} : vector<32x4xf32>, vector<4x32xf32>, vector<32x32xf32> -> vector<32x32xf32>
    %42 = arith.addf %36, %41 : vector<32x32xf32>
    %c0_31 = arith.constant 0 : index
    %c2 = arith.constant 2 : index
    %c0_32 = arith.constant 0 : index
    %43 = vector.load %arg7[%c0_31, %c2, %c0_32] : memref<2x18x4xf32, #tpu.memory_space<vmem>>, vector<2x16x4xf32>
    %44 = vector.shape_cast %43 : vector<2x16x4xf32> to vector<32x4xf32>
    %c2_33 = arith.constant 2 : index
    %c0_34 = arith.constant 0 : index
    %c0_35 = arith.constant 0 : index
    %45 = vector.load %arg2[%c2_33, %c0_34, %c0_35] : memref<3x4x32xf32, #tpu.memory_space<vmem>>, vector<1x4x32xf32>
    %46 = vector.shape_cast %45 : vector<1x4x32xf32> to vector<4x32xf32>
    %cst_36 = arith.constant dense<0.000000e+00> : vector<32x32xf32>
    %47 = tpu.matmul %44, %46, %cst_36 {dimension_numbers = #tpu.dot_dimension_numbers<[1], [0], [0], [1], [0, 0, 1, 1], [], []>} : vector<32x4xf32>, vector<4x32xf32>, vector<32x32xf32> -> vector<32x32xf32>
    %48 = arith.addf %42, %47 : vector<32x32xf32>
    %c0_37 = arith.constant 0 : index
    %c0_38 = arith.constant 0 : index
    %49 = vector.load %arg3[%c0_37, %c0_38] : memref<1x32xf32, #tpu.memory_space<vmem>>, vector<1x32xf32>
    %50 = vector.broadcast %49 : vector<1x32xf32> to vector<32x32xf32>
    %51 = arith.addf %48, %50 : vector<32x32xf32>
    %cst_39 = arith.constant 0.000000e+00 : f32
    %52 = vector.broadcast %cst_39 : f32 to vector<32x32xf32>
    %53 = arith.maximumf %51, %52 : vector<32x32xf32>
    %cst_40 = arith.constant 0.000000e+00 : f32
    %54 = vector.broadcast %cst_40 : f32 to vector<2x1x32xf32>
    %c0_41 = arith.constant 0 : index
    %c0_42 = arith.constant 0 : index
    %c0_43 = arith.constant 0 : index
    %55 = vector.load %arg8[%c0_41, %c0_42, %c0_43] : memref<2x18x32xf32, #tpu.memory_space<vmem>>, vector<2x1x32xf32>
    tpu.vector_store %arg8[%c0_41, %c0_42, %c0_43], %54 {strides = array<i32>} : memref<2x18x32xf32, #tpu.memory_space<vmem>>, vector<2x1x32xf32>,
    %c0_44 = arith.constant 0 : index
    %c17_45 = arith.constant 17 : index
    %c0_46 = arith.constant 0 : index
    %56 = vector.load %arg8[%c0_44, %c17_45, %c0_46] : memref<2x18x32xf32, #tpu.memory_space<vmem>>, vector<2x1x32xf32>
    tpu.vector_store %arg8[%c0_44, %c17_45, %c0_46], %54 {strides = array<i32>} : memref<2x18x32xf32, #tpu.memory_space<vmem>>, vector<2x1x32xf32>,
    %57 = vector.shape_cast %53 : vector<32x32xf32> to vector<2x16x32xf32>
    %c0_47 = arith.constant 0 : index
    %c1_48 = arith.constant 1 : index
    %c0_49 = arith.constant 0 : index
    %58 = vector.load %arg8[%c0_47, %c1_48, %c0_49] : memref<2x18x32xf32, #tpu.memory_space<vmem>>, vector<2x16x32xf32>
    tpu.vector_store %arg8[%c0_47, %c1_48, %c0_49], %57 {strides = array<i32>} : memref<2x18x32xf32, #tpu.memory_space<vmem>>, vector<2x16x32xf32>,
    %c0_50 = arith.constant 0 : index
    %c0_51 = arith.constant 0 : index
    %c0_52 = arith.constant 0 : index
    %59 = vector.load %arg8[%c0_50, %c0_51, %c0_52] : memref<2x18x32xf32, #tpu.memory_space<vmem>>, vector<2x16x32xf32>
    %60 = vector.shape_cast %59 : vector<2x16x32xf32> to vector<32x32xf32>
    %c0_53 = arith.constant 0 : index
    %c0_54 = arith.constant 0 : index
    %c0_55 = arith.constant 0 : index
    %61 = vector.load %arg4[%c0_53, %c0_54, %c0_55] : memref<3x32x32xf32, #tpu.memory_space<vmem>>, vector<1x32x32xf32>
    %62 = vector.shape_cast %61 : vector<1x32x32xf32> to vector<32x32xf32>
    %cst_56 = arith.constant dense<0.000000e+00> : vector<32x32xf32>
    %63 = tpu.matmul %60, %62, %cst_56 {dimension_numbers = #tpu.dot_dimension_numbers<[1], [0], [0], [1], [0, 0, 1, 1], [], []>} : vector<32x32xf32>, vector<32x32xf32>, vector<32x32xf32> -> vector<32x32xf32>
    %c0_57 = arith.constant 0 : index
    %c1_58 = arith.constant 1 : index
    %c0_59 = arith.constant 0 : index
    %64 = vector.load %arg8[%c0_57, %c1_58, %c0_59] : memref<2x18x32xf32, #tpu.memory_space<vmem>>, vector<2x16x32xf32>
    %65 = vector.shape_cast %64 : vector<2x16x32xf32> to vector<32x32xf32>
    %c1_60 = arith.constant 1 : index
    %c0_61 = arith.constant 0 : index
    %c0_62 = arith.constant 0 : index
    %66 = vector.load %arg4[%c1_60, %c0_61, %c0_62] : memref<3x32x32xf32, #tpu.memory_space<vmem>>, vector<1x32x32xf32>
    %67 = vector.shape_cast %66 : vector<1x32x32xf32> to vector<32x32xf32>
    %cst_63 = arith.constant dense<0.000000e+00> : vector<32x32xf32>
    %68 = tpu.matmul %65, %67, %cst_63 {dimension_numbers = #tpu.dot_dimension_numbers<[1], [0], [0], [1], [0, 0, 1, 1], [], []>} : vector<32x32xf32>, vector<32x32xf32>, vector<32x32xf32> -> vector<32x32xf32>
    %69 = arith.addf %63, %68 : vector<32x32xf32>
    %c0_64 = arith.constant 0 : index
    %c2_65 = arith.constant 2 : index
    %c0_66 = arith.constant 0 : index
    %70 = vector.load %arg8[%c0_64, %c2_65, %c0_66] : memref<2x18x32xf32, #tpu.memory_space<vmem>>, vector<2x16x32xf32>
    %71 = vector.shape_cast %70 : vector<2x16x32xf32> to vector<32x32xf32>
    %c2_67 = arith.constant 2 : index
    %c0_68 = arith.constant 0 : index
    %c0_69 = arith.constant 0 : index
    %72 = vector.load %arg4[%c2_67, %c0_68, %c0_69] : memref<3x32x32xf32, #tpu.memory_space<vmem>>, vector<1x32x32xf32>
    %73 = vector.shape_cast %72 : vector<1x32x32xf32> to vector<32x32xf32>
    %cst_70 = arith.constant dense<0.000000e+00> : vector<32x32xf32>
    %74 = tpu.matmul %71, %73, %cst_70 {dimension_numbers = #tpu.dot_dimension_numbers<[1], [0], [0], [1], [0, 0, 1, 1], [], []>} : vector<32x32xf32>, vector<32x32xf32>, vector<32x32xf32> -> vector<32x32xf32>
    %75 = arith.addf %69, %74 : vector<32x32xf32>
    %c0_71 = arith.constant 0 : index
    %c0_72 = arith.constant 0 : index
    %76 = vector.load %arg5[%c0_71, %c0_72] : memref<1x32xf32, #tpu.memory_space<vmem>>, vector<1x32xf32>
    %77 = vector.broadcast %76 : vector<1x32xf32> to vector<32x32xf32>
    %78 = arith.addf %75, %77 : vector<32x32xf32>
    %79 = vector.shape_cast %78 : vector<32x32xf32> to vector<2x16x32xf32>
    %cst_73 = arith.constant dense<0xFF800000> : vector<2x32xf32>
    %80 = vector.multi_reduction <maximumf>, %79, %cst_73 [1] : vector<2x16x32xf32> to vector<2x32xf32>
    %c0_74 = arith.constant 0 : index
    %c0_75 = arith.constant 0 : index
    %81 = vector.load %arg6[%c0_74, %c0_75] : memref<2x32xf32, #tpu.memory_space<vmem>>, vector<2x32xf32>
    tpu.vector_store %arg6[%c0_74, %c0_75], %80 {strides = array<i32>} : memref<2x32xf32, #tpu.memory_space<vmem>>, vector<2x32xf32>,
    return
  }
  func.func @transform_0(%arg0: i32) -> (i32, i32, i32) {
    %c0_i32 = arith.constant 0 : i32
    %c0_i32_0 = arith.constant 0 : i32
    %c0_i32_1 = arith.constant 0 : i32
    return %arg0, %c0_i32, %c0_i32_0 : i32, i32, i32
  }
  func.func @transform_1(%arg0: i32) -> (i32, i32, i32) {
    %c0_i32 = arith.constant 0 : i32
    %c0_i32_0 = arith.constant 0 : i32
    %c0_i32_1 = arith.constant 0 : i32
    %c0_i32_2 = arith.constant 0 : i32
    return %c0_i32, %c0_i32_0, %c0_i32_1 : i32, i32, i32
  }
  func.func @transform_2(%arg0: i32) -> (i32, i32) {
    %c0_i32 = arith.constant 0 : i32
    %c0_i32_0 = arith.constant 0 : i32
    %c0_i32_1 = arith.constant 0 : i32
    return %c0_i32, %c0_i32_0 : i32, i32
  }
  func.func @transform_3(%arg0: i32) -> (i32, i32, i32) {
    %c0_i32 = arith.constant 0 : i32
    %c0_i32_0 = arith.constant 0 : i32
    %c0_i32_1 = arith.constant 0 : i32
    %c0_i32_2 = arith.constant 0 : i32
    return %c0_i32, %c0_i32_0, %c0_i32_1 : i32, i32, i32
  }
  func.func @transform_4(%arg0: i32) -> (i32, i32) {
    %c0_i32 = arith.constant 0 : i32
    %c0_i32_0 = arith.constant 0 : i32
    %c0_i32_1 = arith.constant 0 : i32
    return %c0_i32, %c0_i32_0 : i32, i32
  }
  func.func @transform_5(%arg0: i32) -> (i32, i32) {
    %c0_i32 = arith.constant 0 : i32
    %c0_i32_0 = arith.constant 0 : i32
    return %arg0, %c0_i32 : i32, i32
  }
}

</mosaic_0001>

<llo_original>
// kernel: ts2vec_forward.1
$region0: #{ts2vec_forward.1}
  #allocation0 [shape = 'u32[]', space=smem, size = 0x4, offset = 0x4, fixed_abs, tag = 'smem constant byte address 0x4 - core index']
  #allocation1 [shape = 'u32[72,128]{1,0:T(1,128)}', space=vmem, size = 0x9000, scoped, tag = 'internal scratch']
  #allocation2 [shape = 'f32[2,18,4]{2,1,0:T(8,128)}', space=vmem, size = 0x6000, scoped, tag = 'scratch operand']
  #allocation3 [shape = 'f32[2,18,32]{2,1,0:T(8,128)}', space=vmem, size = 0x6000, scoped, tag = 'scratch operand']
  %s0 = inlined_call_operand.hbm [shape: f32[2,4,16], index: 0, kind: input, shape index: {}]
  %s1 = inlined_call_operand.hbm [shape: f32[3,4,32], index: 1, kind: input, shape index: {}]
  %s2 = inlined_call_operand.vmem [shape: f32[1,32], index: 2, kind: input, shape index: {}]
  %s3 = inlined_call_operand.hbm [shape: f32[3,32,32], index: 3, kind: input, shape index: {}]
  %s4 = inlined_call_operand.vmem [shape: f32[1,32], index: 4, kind: input, shape index: {}]
  %s5 = inlined_call_operand.hbm [shape: f32[2,32], index: 5, kind: output, shape index: {}]
  %s6 = sld [smem:[#allocation0]]
  $region42: #{ts2vec_forward.1} parent=0
    _
  %s8 = ssub.s32 1, %s6
  %s9 = scalar_select 0, %s8, %s6
  $region1: #{ts2vec_forward.1} parent=0
    #allocation4 [shape = 'u8[4096]{0}', space=vmem, size = 0x1000, scoped, tag = 'input window, operand 0, single buffered']
    #allocation5 [shape = 's32[1]{0}', space=sflag, size = 0x4, scoped, tag = 'scoped memory for ts2vec_forward.1']
    #allocation6 [shape = 's32[1]{0}', space=sflag, size = 0x4, scoped, tag = 'scoped memory for ts2vec_forward.1']
    #allocation7 [shape = 'u8[6144]{0}', space=vmem, size = 0x1800, scoped, tag = 'input window, operand 1, single buffered']
    #allocation8 [shape = 's32[1]{0}', space=sflag, size = 0x4, scoped, tag = 'scoped memory for ts2vec_forward.1']
    #allocation9 [shape = 'u8[49152]{0}', space=vmem, size = 0xc000, scoped, tag = 'input window, operand 3, single buffered']
    #allocation10 [shape = 'u8[1024]{0}', space=vmem, size = 0x400, scoped, tag = 'output window, operand 0, single buffered']
    %10 = vsyncpa [#allocation5], 0
    %11 = vsyncpa [#allocation8], 0
    %12 = vsyncpa [#allocation6], 0
    // Predicated region
    $region2: #{ts2vec_forward.1} parent=1 // pred_check
      _
    $region3: #{ts2vec_forward.1} parent=1 // pred_check_branch
      %14 = sbr.rel (0) target = $region5
    $region4: #{ts2vec_forward.1} parent=1 // pred_region
      %16 = vsyncadd [#allocation5], 0
      %s17 = sshll.u32 %s0, 4
      %s18 = int_to_ptr.hbm [resolvable:$true] %s17
      %s19 = sshll.u32 [#allocation4], 4
      %s20 = int_to_ptr.vmem [resolvable:$true] %s19
      %25 = dma.hbm_to_vmem [thread:$0]  %s18, 128, %s20, [#allocation5], 64, 64, 4
    $region5: #{ts2vec_forward.1} parent=1 // pred_fallthru
      _
    // Predicated region
    $region6: #{ts2vec_forward.1} parent=1 // pred_check
      _
    $region7: #{ts2vec_forward.1} parent=1 // pred_check_branch
      %27 = sbr.rel (0) target = $region9
    $region8: #{ts2vec_forward.1} parent=1 // pred_region
      %29 = vsyncadd [#allocation8], 0
      %s30 = sshll.u32 %s1, 4
      %s31 = int_to_ptr.hbm [resolvable:$true] %s30
      %s32 = sshll.u32 [#allocation7], 4
      %s33 = int_to_ptr.vmem [resolvable:$true] %s32
      %38 = dma.hbm_to_vmem [thread:$0]  %s31, 192, %s33, [#allocation8], 64, 64, 4
    $region9: #{ts2vec_forward.1} parent=1 // pred_fallthru
      _
    // Predicated region
    $region10: #{ts2vec_forward.1} parent=1 // pred_check
      _
    $region11: #{ts2vec_forward.1} parent=1 // pred_check_branch
      %40 = sbr.rel (0) target = $region13
    $region12: #{ts2vec_forward.1} parent=1 // pred_region
      _
    $region13: #{ts2vec_forward.1} parent=1 // pred_fallthru
      _
    // Predicated region
    $region14: #{ts2vec_forward.1} parent=1 // pred_check
      _
    $region15: #{ts2vec_forward.1} parent=1 // pred_check_branch
      %42 = sbr.rel (0) target = $region17
    $region16: #{ts2vec_forward.1} parent=1 // pred_region
      %44 = vsyncadd [#allocation8], 0
      %s45 = sshll.u32 %s3, 4
      %s46 = int_to_ptr.hbm [resolvable:$true] %s45
      %s47 = sshll.u32 [#allocation9], 4
      %s48 = int_to_ptr.vmem [resolvable:$true] %s47
      %53 = dma.hbm_to_vmem [thread:$0]  %s46, 1536, %s48, [#allocation8], 128, 128, 8
    $region17: #{ts2vec_forward.1} parent=1 // pred_fallthru
      _
    // Predicated region
    $region18: #{ts2vec_forward.1} parent=1 // pred_check
      _
    $region19: #{ts2vec_forward.1} parent=1 // pred_check_branch
      %55 = sbr.rel (0) target = $region21
    $region20: #{ts2vec_forward.1} parent=1 // pred_region
      _
    $region21: #{ts2vec_forward.1} parent=1 // pred_fallthru
      _
    // Predicated region
    $region22: #{ts2vec_forward.1} parent=1 // pred_check
      _
    $region23: #{ts2vec_forward.1} parent=1 // pred_check_branch
      %57 = sbr.rel (0) target = $region25
    $region24: #{ts2vec_forward.1} parent=1 // pred_region
      %59 = dma.done [#allocation5], 128
    $region25: #{ts2vec_forward.1} parent=1 // pred_fallthru
      _
    // Predicated region
    $region26: #{ts2vec_forward.1} parent=1 // pred_check
      _
    $region27: #{ts2vec_forward.1} parent=1 // pred_check_branch
      %61 = sbr.rel (0) target = $region29
    $region28: #{ts2vec_forward.1} parent=1 // pred_region
      %63 = dma.done [#allocation8], 192
    $region29: #{ts2vec_forward.1} parent=1 // pred_fallthru
      _
    // Predicated region
    $region30: #{ts2vec_forward.1} parent=1 // pred_check
      _
    $region31: #{ts2vec_forward.1} parent=1 // pred_check_branch
      %65 = sbr.rel (0) target = $region33
    $region32: #{ts2vec_forward.1} parent=1 // pred_region
      %67 = dma.done [#allocation8], 1536
    $region33: #{ts2vec_forward.1} parent=1 // pred_fallthru
      _
    %v68 = vld [vmem:[#allocation4] sm:$0xf]
    %v69 = vld [vmem:[#allocation4 + $0x4] sm:$0xf]
    %vm70 = vcmask 125952
    %v71 = vsel %vm70, %v68, 0.0
    %72 = vadd.xlane.f32.xlu0 %v71
    %v73 = vpop.xlane.xlu0 %72
    %v74 = vsel %vm70, %v69, 0.0
    %75 = vadd.xlane.f32.xlu0 %v74
    %v76 = vpop.xlane.xlu0 %75
    %v77 = vrcp.pop 16.0
    %v78 = vmul.f32 16.0, %v77
    %v79 = vsub.f32 1.0, %v78
    %v80 = vmul.f32 %v77, %v79
    %v81 = vadd.f32 %v77, %v80
    %vm82 = vweird.f32 %v77
    %v83 = vsel %vm82, %v77, %v81
    %v84 = vmul.f32 %v73, %v83
    %v85 = vmul.f32 %v76, %v83
    %v86 = vsub.f32 %v68, %v84
    %v87 = vsub.f32 %v69, %v85
    %v88 = vmul.f32 %v86, %v86
    %v89 = vmul.f32 %v87, %v87
    %v90 = vsel %vm70, %v88, 0.0
    %91 = vadd.xlane.f32.xlu0 %v90
    %v92 = vpop.xlane.xlu0 %91
    %v93 = vsel %vm70, %v89, 0.0
    %94 = vadd.xlane.f32.xlu0 %v93
    %v95 = vpop.xlane.xlu0 %94
    %v96 = vmul.f32 %v92, %v83
    %v97 = vmul.f32 %v95, %v83
    %v98 = vadd.f32 %v96, 1e-08
    %v99 = vadd.f32 %v97, 1e-08
    %v100 = vrsqrt.pop %v98
    %v101 = vmul.f32 %v100, %v98
    %v102 = vmul.f32 %v101, %v100
    %v103 = vmul.f32 0.5, %v102
    %v104 = vsub.f32 1.5, %v103
    %v105 = vmul.f32 %v100, %v104
    %vm106 = vweird.f32 %v98
    %vm107 = vweird.f32 %v100
    %vm108 = vmor %vm106, %vm107
    %v109 = vsel %vm108, %v100, %v105
    %v110 = vrsqrt.pop %v99
    %v111 = vmul.f32 %v110, %v99
    %v112 = vmul.f32 %v111, %v110
    %v113 = vmul.f32 0.5, %v112
    %v114 = vsub.f32 1.5, %v113
    %v115 = vmul.f32 %v110, %v114
    %vm116 = vweird.f32 %v99
    %vm117 = vweird.f32 %v110
    %vm118 = vmor %vm116, %vm117
    %v119 = vsel %vm118, %v110, %v115
    %v120 = vmul.f32 %v86, %v109
    %v121 = vmul.f32 %v87, %v119
    %vm122 = vcmask 24576
    %123 = vst.msk [vmem:[#allocation2] sm:$0x1] %vm122, 0.0
    %124 = vst.msk [vmem:[#allocation2 + $0x18] sm:$0x1] %vm122, 0.0
    %125 = vst.msk [vmem:[#allocation2 + $0x11] sm:$0x1] %vm122, 0.0
    %126 = vst.msk [vmem:[#allocation2 + $0x29] sm:$0x1] %vm122, 0.0
    %127 = vxpose.xlu0.b32.start [1/16] %v120, 128
    %128 = vxpose.xlu0.b32.cont [2/16] 0.0, 128
    %129 = vxpose.xlu0.b32.cont [3/16] 0.0, 128
    %130 = vxpose.xlu0.b32.cont [4/16] 0.0, 128
    %131 = vxpose.xlu0.b32.cont [5/16] 0.0, 128
    %132 = vxpose.xlu0.b32.cont [6/16] 0.0, 128
    %133 = vxpose.xlu0.b32.cont [7/16] 0.0, 128
    %134 = vxpose.xlu0.b32.cont [8/16] 0.0, 128
    %135 = vxpose.xlu0.b32.cont [9/16] 0.0, 128
    %136 = vxpose.xlu0.b32.cont [10/16] 0.0, 128
    %137 = vxpose.xlu0.b32.cont [11/16] 0.0, 128
    %138 = vxpose.xlu0.b32.cont [12/16] 0.0, 128
    %139 = vxpose.xlu0.b32.cont [13/16] 0.0, 128
    %140 = vxpose.xlu0.b32.cont [14/16] 0.0, 128
    %141 = vxpose.xlu0.b32.cont [15/16] 0.0, 128
    %142 = vxpose.xlu0.b32.end [16/16] 0.0, 128
    %v143 = vpop.trf.xlu0
    %v144 = vpop.trf.xlu0
    %v145 = vpop.trf.xlu0
    %v146 = vpop.trf.xlu0
    %v147 = vpop.trf.xlu0
    %v148 = vpop.trf.xlu0
    %v149 = vpop.trf.xlu0
    %v150 = vpop.trf.xlu0
    %v151 = vpop.trf.xlu0
    %v152 = vpop.trf.xlu0
    %v153 = vpop.trf.xlu0
    %v154 = vpop.trf.xlu0
    %v155 = vpop.trf.xlu0
    %v156 = vpop.trf.xlu0
    %v157 = vpop.trf.xlu0
    %v158 = vpop.trf.xlu0
    %vm159 = vcmask 31744
    %160 = vst.msk [vmem:[#allocation2 + $0x1] sm:$0xff] %vm159, %v143
    %161 = vst.msk [vmem:[#allocation2 + $0x9] sm:$0xff] %vm159, %v144
    %162 = vxpose.xlu0.b32.start [1/16] %v121, 128
    %163 = vxpose.xlu0.b32.cont [2/16] 0.0, 128
    %164 = vxpose.xlu0.b32.cont [3/16] 0.0, 128
    %165 = vxpose.xlu0.b32.cont [4/16] 0.0, 128
    %166 = vxpose.xlu0.b32.cont [5/16] 0.0, 128
    %167 = vxpose.xlu0.b32.cont [6/16] 0.0, 128
    %168 = vxpose.xlu0.b32.cont [7/16] 0.0, 128
    %169 = vxpose.xlu0.b32.cont [8/16] 0.0, 128
    %170 = vxpose.xlu0.b32.cont [9/16] 0.0, 128
    %171 = vxpose.xlu0.b32.cont [10/16] 0.0, 128
    %172 = vxpose.xlu0.b32.cont [11/16] 0.0, 128
    %173 = vxpose.xlu0.b32.cont [12/16] 0.0, 128
    %174 = vxpose.xlu0.b32.cont [13/16] 0.0, 128
    %175 = vxpose.xlu0.b32.cont [14/16] 0.0, 128
    %176 = vxpose.xlu0.b32.cont [15/16] 0.0, 128
    %177 = vxpose.xlu0.b32.end [16/16] 0.0, 128
    %v178 = vpop.trf.xlu0
    %v179 = vpop.trf.xlu0
    %v180 = vpop.trf.xlu0
    %v181 = vpop.trf.xlu0
    %v182 = vpop.trf.xlu0
    %v183 = vpop.trf.xlu0
    %v184 = vpop.trf.xlu0
    %v185 = vpop.trf.xlu0
    %v186 = vpop.trf.xlu0
    %v187 = vpop.trf.xlu0
    %v188 = vpop.trf.xlu0
    %v189 = vpop.trf.xlu0
    %v190 = vpop.trf.xlu0
    %v191 = vpop.trf.xlu0
    %v192 = vpop.trf.xlu0
    %v193 = vpop.trf.xlu0
    %s194 = scalar_lea.vmem [#allocation2], 24
    %195 = vst.msk [vmem:[%s194 + $0x1] sm:$0xff] %vm159, %v178
    %196 = vst.msk [vmem:[%s194 + $0x9] sm:$0xff] %vm159, %v179
    %v197 = vld [vmem:[#allocation2] sm:$0xff]
    %v198 = vld [vmem:[#allocation2 + $0x8] sm:$0xff]
    %v199 = vld [vmem:[#allocation2 + $0x18] sm:$0xff]
    %v200 = vld [vmem:[#allocation2 + $0x20] sm:$0xff]
    %v201 = vld [vmem:[#allocation7] sm:$0xf]
    %v202 = vld [vmem:[#allocation2 + $0x1] sm:$0xff]
    %v203 = vld [vmem:[#allocation2 + $0x9] sm:$0xff]
    %v204 = vld [vmem:[#allocation2 + $0x19] sm:$0xff]
    %v205 = vld [vmem:[#allocation2 + $0x21] sm:$0xff]
    %s206 = scalar_lea.vmem [#allocation7], 4
    %v207 = vld [vmem:[%s206] sm:$0xf]
    %v209 = vsel %vm159, %v202, 0
    %v212 = vsel %vm159, %v203, 0
    %v215 = vsel %vm159, %v204, 0
    %v218 = vsel %vm159, %v205, 0
    %vm220 = vcmask 1043456
    %v222 = vsel %vm220, %v207, 0
    %224 = vmatpush.msra.mxu0 0.0
    %225 = vmatpush.msra.mxu0 0.0
    %226 = vmatpush.msra.mxu0 0.0
    %227 = vmatpush.msra.mxu0 0.0
    %228 = vmatpush.msra.mxu0 0.0
    %229 = vmatpush.msra.mxu0 0.0
    %230 = vmatpush.msra.mxu0 0.0
    %231 = vmatpush.msra.mxu0 0.0
    %232 = vmatpush.msra.mxu0 0.0
    %233 = vmatpush.msra.mxu0 0.0
    %234 = vmatpush.msra.mxu0 0.0
    %235 = vmatpush.msra.mxu0 0.0
    %236 = vmatpush.msra.mxu0 0.0
    %237 = vmatpush.msra.mxu0 0.0
    %238 = vmatpush.msra.mxu0 0.0
    %239 = vmatpush.msra.mxu0 %v222
    %240 = vmatmul.f32.gmra.mxu0 %v209
    %v241 = vpop.f32.mrf.mxu0
    %v242 = vadd.f32 0.0, %v241
    %243 = vmatmul.f32.gmra.mxu0 %v212
    %v244 = vpop.f32.mrf.mxu0
    %v245 = vadd.f32 0.0, %v244
    %246 = vmatmul.f32.gmra.mxu0 %v215
    %v247 = vpop.f32.mrf.mxu0
    %v248 = vadd.f32 0.0, %v247
    %249 = vmatmul.f32.gmra.mxu0 %v218
    %v250 = vpop.f32.mrf.mxu0
    %v251 = vadd.f32 0.0, %v250
    %252 = vdwg.mxu0
    %v254 = vsel %vm159, %v197, 0
    %v257 = vsel %vm159, %v198, 0
    %v260 = vsel %vm159, %v199, 0
    %v263 = vsel %vm159, %v200, 0
    %v266 = vsel %vm220, %v201, 0
    %268 = vmatpush.msra.mxu0 0.0
    %269 = vmatpush.msra.mxu0 0.0
    %270 = vmatpush.msra.mxu0 0.0
    %271 = vmatpush.msra.mxu0 0.0
    %272 = vmatpush.msra.mxu0 0.0
    %273 = vmatpush.msra.mxu0 0.0
    %274 = vmatpush.msra.mxu0 0.0
    %275 = vmatpush.msra.mxu0 0.0
    %276 = vmatpush.msra.mxu0 0.0
    %277 = vmatpush.msra.mxu0 0.0
    %278 = vmatpush.msra.mxu0 0.0
    %279 = vmatpush.msra.mxu0 0.0
    %280 = vmatpush.msra.mxu0 0.0
    %281 = vmatpush.msra.mxu0 0.0
    %282 = vmatpush.msra.mxu0 0.0
    %283 = vmatpush.msra.mxu0 %v266
    %284 = vmatmul.f32.gmra.mxu0 %v254
    %v285 = vpop.f32.mrf.mxu0
    %v286 = vadd.f32 %v242, %v285
    %287 = vmatmul.f32.gmra.mxu0 %v257
    %v288 = vpop.f32.mrf.mxu0
    %v289 = vadd.f32 %v245, %v288
    %290 = vmatmul.f32.gmra.mxu0 %v260
    %v291 = vpop.f32.mrf.mxu0
    %v292 = vadd.f32 %v248, %v291
    %293 = vmatmul.f32.gmra.mxu0 %v263
    %v294 = vpop.f32.mrf.mxu0
    %v295 = vadd.f32 %v251, %v294
    %296 = vdwg.mxu0
    %v297 = vld [vmem:[#allocation2 + $0x2] sm:$0xff]
    %v298 = vld [vmem:[#allocation2 + $0xa] sm:$0xff]
    %v299 = vld [vmem:[#allocation2 + $0x1a] sm:$0xff]
    %v300 = vld [vmem:[#allocation2 + $0x22] sm:$0xff]
    %s301 = scalar_lea.vmem [#allocation7], 8
    %v302 = vld [vmem:[%s301] sm:$0xf]
    %v304 = vsel %vm159, %v297, 0
    %v307 = vsel %vm159, %v298, 0
    %v310 = vsel %vm159, %v299, 0
    %v313 = vsel %vm159, %v300, 0
    %v316 = vsel %vm220, %v302, 0
    %318 = vmatpush.msra.mxu0 0.0
    %319 = vmatpush.msra.mxu0 0.0
    %320 = vmatpush.msra.mxu0 0.0
    %321 = vmatpush.msra.mxu0 0.0
    %322 = vmatpush.msra.mxu0 0.0
    %323 = vmatpush.msra.mxu0 0.0
    %324 = vmatpush.msra.mxu0 0.0
    %325 = vmatpush.msra.mxu0 0.0
    %326 = vmatpush.msra.mxu0 0.0
    %327 = vmatpush.msra.mxu0 0.0
    %328 = vmatpush.msra.mxu0 0.0
    %329 = vmatpush.msra.mxu0 0.0
    %330 = vmatpush.msra.mxu0 0.0
    %331 = vmatpush.msra.mxu0 0.0
    %332 = vmatpush.msra.mxu0 0.0
    %333 = vmatpush.msra.mxu0 %v316
    %334 = vmatmul.f32.gmra.mxu0 %v304
    %v335 = vpop.f32.mrf.mxu0
    %v336 = vadd.f32 0.0, %v335
    %337 = vmatmul.f32.gmra.mxu0 %v307
    %v338 = vpop.f32.mrf.mxu0
    %v339 = vadd.f32 0.0, %v338
    %340 = vmatmul.f32.gmra.mxu0 %v310
    %v341 = vpop.f32.mrf.mxu0
    %v342 = vadd.f32 0.0, %v341
    %343 = vmatmul.f32.gmra.mxu0 %v313
    %v344 = vpop.f32.mrf.mxu0
    %v345 = vadd.f32 0.0, %v344
    %346 = vdwg.mxu0
    %v347 = vadd.f32 %v286, %v336
    %v348 = vadd.f32 %v289, %v339
    %v349 = vadd.f32 %v292, %v342
    %v350 = vadd.f32 %v295, %v345
    %v351 = vld [vmem:[%s2] sm:$0x1]
    %v353 = vperm.slane %v351, 0
    %v355 = vadd.f32 %v347, %v353
    %v356 = vadd.f32 %v348, %v353
    %v357 = vadd.f32 %v349, %v353
    %v358 = vadd.f32 %v350, %v353
    %v359 = vmax.f32 %v355, 0.0
    %v360 = vmax.f32 %v356, 0.0
    %v361 = vmax.f32 %v357, 0.0
    %v362 = vmax.f32 %v358, 0.0
    %vm363 = vcmask 253952
    %364 = vst.msk [vmem:[#allocation3] sm:$0x1] %vm363, 0.0
    %365 = vst.msk [vmem:[#allocation3 + $0x18] sm:$0x1] %vm363, 0.0
    %366 = vst.msk [vmem:[#allocation3 + $0x11] sm:$0x1] %vm363, 0.0
    %367 = vst.msk [vmem:[#allocation3 + $0x29] sm:$0x1] %vm363, 0.0
    %vm368 = vcmask 261120
    %369 = vst.msk [vmem:[#allocation3 + $0x1] sm:$0xff] %vm368, %v359
    %370 = vst.msk [vmem:[#allocation3 + $0x9] sm:$0xff] %vm368, %v360
    %371 = vst.msk [vmem:[#allocation3 + $0x19] sm:$0xff] %vm368, %v361
    %372 = vst.msk [vmem:[#allocation3 + $0x21] sm:$0xff] %vm368, %v362
    %v373 = vld [vmem:[#allocation3] sm:$0xff]
    %v374 = vld [vmem:[#allocation3 + $0x8] sm:$0xff]
    %v375 = vld [vmem:[#allocation3 + $0x18] sm:$0xff]
    %v376 = vld [vmem:[#allocation3 + $0x20] sm:$0xff]
    %v377 = vld [vmem:[#allocation9] sm:$0xff]
    %v378 = vld [vmem:[#allocation9 + $0x8] sm:$0xff]
    %v379 = vld [vmem:[#allocation9 + $0x10] sm:$0xff]
    %v380 = vld [vmem:[#allocation9 + $0x18] sm:$0xff]
    %v381 = vld [vmem:[#allocation3 + $0x1] sm:$0xff]
    %v382 = vld [vmem:[#allocation3 + $0x9] sm:$0xff]
    %v383 = vld [vmem:[#allocation3 + $0x19] sm:$0xff]
    %v384 = vld [vmem:[#allocation3 + $0x21] sm:$0xff]
    %s385 = scalar_lea.vmem [#allocation9], 32
    %v386 = vld [vmem:[%s385] sm:$0xff]
    %v387 = vld [vmem:[%s385 + $0x8] sm:$0xff]
    %v388 = vld [vmem:[%s385 + $0x10] sm:$0xff]
    %v389 = vld [vmem:[%s385 + $0x18] sm:$0xff]
    %v391 = vsel %vm368, %v381, 0
    %v394 = vsel %vm368, %v382, 0
    %v397 = vsel %vm368, %v383, 0
    %v400 = vsel %vm368, %v384, 0
    %402 = vmatpush.msra.mxu0 0.0
    %403 = vmatpush.msra.mxu0 0.0
    %404 = vmatpush.msra.mxu0 0.0
    %405 = vmatpush.msra.mxu0 0.0
    %406 = vmatpush.msra.mxu0 0.0
    %407 = vmatpush.msra.mxu0 0.0
    %408 = vmatpush.msra.mxu0 0.0
    %409 = vmatpush.msra.mxu0 0.0
    %410 = vmatpush.msra.mxu0 0.0
    %411 = vmatpush.msra.mxu0 0.0
    %412 = vmatpush.msra.mxu0 0.0
    %413 = vmatpush.msra.mxu0 0.0
    %414 = vmatpush.msra.mxu0 %v389
    %415 = vmatpush.msra.mxu0 %v388
    %416 = vmatpush.msra.mxu0 %v387
    %417 = vmatpush.msra.mxu0 %v386
    %418 = vmatmul.f32.gmra.mxu0 %v391
    %v419 = vpop.f32.mrf.mxu0
    %v420 = vadd.f32 0.0, %v419
    %421 = vmatmul.f32.gmra.mxu0 %v394
    %v422 = vpop.f32.mrf.mxu0
    %v423 = vadd.f32 0.0, %v422
    %424 = vmatmul.f32.gmra.mxu0 %v397
    %v425 = vpop.f32.mrf.mxu0
    %v426 = vadd.f32 0.0, %v425
    %427 = vmatmul.f32.gmra.mxu0 %v400
    %v428 = vpop.f32.mrf.mxu0
    %v429 = vadd.f32 0.0, %v428
    %430 = vdwg.mxu0
    %v432 = vsel %vm368, %v373, 0
    %v435 = vsel %vm368, %v374, 0
    %v438 = vsel %vm368, %v375, 0
    %v441 = vsel %vm368, %v376, 0
    %443 = vmatpush.msra.mxu0 0.0
    %444 = vmatpush.msra.mxu0 0.0
    %445 = vmatpush.msra.mxu0 0.0
    %446 = vmatpush.msra.mxu0 0.0
    %447 = vmatpush.msra.mxu0 0.0
    %448 = vmatpush.msra.mxu0 0.0
    %449 = vmatpush.msra.mxu0 0.0
    %450 = vmatpush.msra.mxu0 0.0
    %451 = vmatpush.msra.mxu0 0.0
    %452 = vmatpush.msra.mxu0 0.0
    %453 = vmatpush.msra.mxu0 0.0
    %454 = vmatpush.msra.mxu0 0.0
    %455 = vmatpush.msra.mxu0 %v380
    %456 = vmatpush.msra.mxu0 %v379
    %457 = vmatpush.msra.mxu0 %v378
    %458 = vmatpush.msra.mxu0 %v377
    %459 = vmatmul.f32.gmra.mxu0 %v432
    %v460 = vpop.f32.mrf.mxu0
    %v461 = vadd.f32 %v420, %v460
    %462 = vmatmul.f32.gmra.mxu0 %v435
    %v463 = vpop.f32.mrf.mxu0
    %v464 = vadd.f32 %v423, %v463
    %465 = vmatmul.f32.gmra.mxu0 %v438
    %v466 = vpop.f32.mrf.mxu0
    %v467 = vadd.f32 %v426, %v466
    %468 = vmatmul.f32.gmra.mxu0 %v441
    %v469 = vpop.f32.mrf.mxu0
    %v470 = vadd.f32 %v429, %v469
    %471 = vdwg.mxu0
    %v472 = vld [vmem:[#allocation3 + $0x2] sm:$0xff]
    %v473 = vld [vmem:[#allocation3 + $0xa] sm:$0xff]
    %v474 = vld [vmem:[#allocation3 + $0x1a] sm:$0xff]
    %v475 = vld [vmem:[#allocation3 + $0x22] sm:$0xff]
    %s476 = scalar_lea.vmem [#allocation9], 64
    %v477 = vld [vmem:[%s476] sm:$0xff]
    %v478 = vld [vmem:[%s476 + $0x8] sm:$0xff]
    %v479 = vld [vmem:[%s476 + $0x10] sm:$0xff]
    %v480 = vld [vmem:[%s476 + $0x18] sm:$0xff]
    %v482 = vsel %vm368, %v472, 0
    %v485 = vsel %vm368, %v473, 0
    %v488 = vsel %vm368, %v474, 0
    %v491 = vsel %vm368, %v475, 0
    %493 = vmatpush.msra.mxu0 0.0
    %494 = vmatpush.msra.mxu0 0.0
    %495 = vmatpush.msra.mxu0 0.0
    %496 = vmatpush.msra.mxu0 0.0
    %497 = vmatpush.msra.mxu0 0.0
    %498 = vmatpush.msra.mxu0 0.0
    %499 = vmatpush.msra.mxu0 0.0
    %500 = vmatpush.msra.mxu0 0.0
    %501 = vmatpush.msra.mxu0 0.0
    %502 = vmatpush.msra.mxu0 0.0
    %503 = vmatpush.msra.mxu0 0.0
    %504 = vmatpush.msra.mxu0 0.0
    %505 = vmatpush.msra.mxu0 %v480
    %506 = vmatpush.msra.mxu0 %v479
    %507 = vmatpush.msra.mxu0 %v478
    %508 = vmatpush.msra.mxu0 %v477
    %509 = vmatmul.f32.gmra.mxu0 %v482
    %v510 = vpop.f32.mrf.mxu0
    %v511 = vadd.f32 0.0, %v510
    %512 = vmatmul.f32.gmra.mxu0 %v485
    %v513 = vpop.f32.mrf.mxu0
    %v514 = vadd.f32 0.0, %v513
    %515 = vmatmul.f32.gmra.mxu0 %v488
    %v516 = vpop.f32.mrf.mxu0
    %v517 = vadd.f32 0.0, %v516
    %518 = vmatmul.f32.gmra.mxu0 %v491
    %v519 = vpop.f32.mrf.mxu0
    %v520 = vadd.f32 0.0, %v519
    %521 = vdwg.mxu0
    %v522 = vadd.f32 %v461, %v511
    %v523 = vadd.f32 %v464, %v514
    %v524 = vadd.f32 %v467, %v517
    %v525 = vadd.f32 %v470, %v520
    %v526 = vld [vmem:[%s4] sm:$0x1]
    %v528 = vperm.slane %v526, 0
    %v530 = vadd.f32 %v522, %v528
    %v531 = vadd.f32 %v523, %v528
    %v532 = vadd.f32 %v524, %v528
    %v533 = vadd.f32 %v525, %v528
    %v534 = vsel %vm368, %v530, -inf
    %v535 = vsel %vm368, %v531, -inf
    %v536 = vmax.f32 %v534, %v535
    %v537 = vrot.slane %v536, 4
    %v538 = vmax.f32 %v536, %v537
    %v539 = vrot.slane %v538, 2
    %v540 = vmax.f32 %v538, %v539
    %v541 = vrot.slane %v540, 1
    %v542 = vmax.f32 %v540, %v541
    %v543 = vsel %vm368, %v532, -inf
    %v544 = vsel %vm368, %v533, -inf
    %v545 = vmax.f32 %v543, %v544
    %v546 = vrot.slane %v545, 4
    %v547 = vmax.f32 %v545, %v546
    %v548 = vrot.slane %v547, 2
    %v549 = vmax.f32 %v547, %v548
    %v550 = vrot.slane %v549, 1
    %v551 = vmax.f32 %v549, %v550
    %vm554 = vcmask 1041409
    %v555 = vsel %vm554, %v551, %v542
    %vm557 = vcmask 254976
    %558 = vst.msk [vmem:[#allocation10] sm:$0x3] %vm557, %v555
    // Predicated region
    $region34: #{ts2vec_forward.1} parent=1 // pred_check
      _
    $region35: #{ts2vec_forward.1} parent=1 // pred_check_branch
      %560 = sbr.rel (0) target = $region37
    $region36: #{ts2vec_forward.1} parent=1 // pred_region
      %562 = vsyncadd [#allocation6], 0
      %s564 = sshll.u32 [#allocation10], 4
      %s565 = int_to_ptr.vmem [resolvable:$true] %s564
      %s566 = sshll.u32 %s5, 4
      %s567 = int_to_ptr.hbm [resolvable:$true] %s566
      %569 = dma.vmem_to_hbm [thread:$0]  %s565, 32, %s567, [#allocation6]
    $region37: #{ts2vec_forward.1} parent=1 // pred_fallthru
      _
    // Predicated region
    $region38: #{ts2vec_forward.1} parent=1 // pred_check
      _
    $region39: #{ts2vec_forward.1} parent=1 // pred_check_branch
      %571 = sbr.rel (0) target = $region41
    $region40: #{ts2vec_forward.1} parent=1 // pred_region
      %573 = dma.done [#allocation6], 32
    $region41: #{ts2vec_forward.1} parent=1 // pred_fallthru
      _
    %574 = vsyncpa [#allocation5], 1
    %575 = vsyncpa [#allocation8], 1
    %576 = vsyncpa [#allocation6], 1

</llo_original>
